<compile_context>
chip_gen: v7x
topology: tpu7x:2x2x1
jax: 0.10.0
libtpu: 0.0.40
codegen_flags: <defaults>
</compile_context>

<pallas_src>
import jax
import jax.numpy as jnp
from jax.experimental import pallas as pl
from jax.experimental.pallas import tpu as pltpu


def mlp_kernel(x_ref, w1_ref, b1_ref, w2_ref, b2_ref, out_ref):
    # ---- fc1 on the MXU in f32 (mem-bound shape), bias + ReLU on the VPU.
    h = jnp.dot(x_ref[...], w1_ref[...], preferred_element_type=jnp.float32)
    h = jnp.maximum(h + b1_ref[...], 0.0)                     # (tb, H) f32

    # ---- fc2 (O == 1): VPU multiply + XLU lane reduce over H (no degenerate
    # N=1 MXU pass).
    o = jnp.sum(h * w2_ref[...], axis=-1, keepdims=True)      # (tb, 1)
    o = jax.nn.sigmoid(o + b2_ref[0, 0])                      # SMEM scalar bias

    # ---- Lane-pack: (tb, 1) column -> (1, tb) row (small XLU transpose) so
    # the store is one unmasked lane-dense block and output HBM is 4 B/row.
    out_ref[...] = jnp.transpose(o)                           # out block (1, tb)


def _round_up8(n):
    return ((n + 7) // 8) * 8


def neural_net_forward(x, w1, b1, w2, b2, *, tile_b=2048):
    """Fused forward pass.

    x : (B, F) float32
    w1: (F, H) float32          (fc1 weight, pre-transposed)
    b1: (H,) / (1, H)
    w2: (H, 1) / (1, H) / (H,)  (fc2 weight, O == 1)
    b2: () / (1,) / (1, 1)
    Returns (B, 1) float32.
    """
    B, F = x.shape
    H = w1.shape[1]

    x_f = jnp.asarray(x, jnp.float32)          # no wrapper bf16 round trip
    w1_f = jnp.asarray(w1, jnp.float32)
    b1_r = jnp.asarray(b1, jnp.float32).reshape(1, H)
    w2_row = jnp.asarray(w2, jnp.float32).reshape(1, H)       # O == 1
    b2_s = jnp.asarray(b2, jnp.float32).reshape(1, 1)

    # Batch tile: large tiles amortize per-step overhead; for mid-size batches
    # split into >=2 steps so the "parallel" axis can use v7x's second TC.
    if B > tile_b:
        tb = tile_b
    elif B > 1024:
        tb = _round_up8(pl.cdiv(B, 2))
    else:
        tb = _round_up8(B)
    num_tiles = pl.cdiv(B, tb)                 # ragged last block, no jnp.pad

    out = pl.pallas_call(
        mlp_kernel,
        out_shape=jax.ShapeDtypeStruct((num_tiles, 1, tb), jnp.float32),
        grid=(num_tiles,),
        in_specs=[
            # x: tiled along batch; last block may be ragged (extra rows are
            # garbage and dropped by the wrapper reshape below).
            pl.BlockSpec((tb, F), lambda i: (i, 0)),
            # Weights / b1 / w2: constant index_map -> VMEM-resident.
            pl.BlockSpec((F, H), lambda i: (0, 0)),
            pl.BlockSpec((1, H), lambda i: (0, 0)),
            pl.BlockSpec((1, H), lambda i: (0, 0)),
            # b2: scalar in SMEM (no padded vreg tile, no vector load).
            pl.BlockSpec(memory_space=pltpu.MemorySpace.SMEM),
        ],
        # Lane-packed output: one dense (1, tb) row per grid step.
        out_specs=pl.BlockSpec((None, 1, tb), lambda i: (i, 0, 0)),
        compiler_params=pltpu.CompilerParams(
            dimension_semantics=("parallel",)),
    )(x_f, w1_f, b1_r, w2_row, b2_s)

    # Contiguous reshape + slice (useful payload is only 4 B/row).
    return out.reshape(-1)[:B].reshape(B, 1)


def reference_forward(x, w1, b1, w2, b2):
    h = jnp.maximum(x @ w1 + jnp.reshape(b1, (1, -1)), 0.0)
    return jax.nn.sigmoid(h @ jnp.reshape(w2, (-1, 1)) + jnp.reshape(b2, (1, 1)))


if __name__ == "__main__":
    # Breast-cancer dataset implies input_size = 30 features; hidden_size = 64,
    # output_size = 1 per the module. Small batch for the demo.
    batch = 8
    input_size = 30
    hidden_size = 64
    output_size = 1

    key = jax.random.PRNGKey(0)
    kx, kw1, kb1, kw2, kb2 = jax.random.split(key, 5)

    x = jax.random.normal(kx, (batch, input_size), dtype=jnp.float32)

    # Deterministic nn.Linear-style init, stored pre-transposed: W1 (F, H), W2 (H, O).
    bound1 = 1.0 / (input_size ** 0.5)
    w1 = jax.random.uniform(kw1, (input_size, hidden_size), jnp.float32,
                            -bound1, bound1)
    b1 = jax.random.uniform(kb1, (hidden_size,), jnp.float32, -bound1, bound1)

    bound2 = 1.0 / (hidden_size ** 0.5)
    w2 = jax.random.uniform(kw2, (hidden_size, output_size), jnp.float32,
                            -bound2, bound2)
    b2 = jax.random.uniform(kb2, (output_size,), jnp.float32, -bound2, bound2)

    out = neural_net_forward(x, w1, b1, w2, b2)
    out = jax.block_until_ready(out)

    ref = reference_forward(x, w1, b1, w2, b2)
    assert out.shape == (batch, output_size)
    # Pure-f32 pipeline now: only matmul-precision / reduction-order noise left.
    assert jnp.allclose(out, ref, atol=2e-3, rtol=2e-3), "mismatch vs reference"

    print("KERNEL_OK")
</pallas_src>

<mosaic_0001>
module attributes {stable_mosaic.version = 11 : i64} {
  func.func @mlp_kernel(%arg0: i32, %arg1: memref<8x30xf32, #tpu.memory_space<vmem>>, %arg2: memref<30x64xf32, #tpu.memory_space<vmem>>, %arg3: memref<1x64xf32, #tpu.memory_space<vmem>>, %arg4: memref<1x64xf32, #tpu.memory_space<vmem>>, %arg5: memref<1x1xf32, #tpu.memory_space<smem>>, %arg6: memref<1x1x8xf32, #tpu.memory_space<vmem>>) attributes {dimension_semantics = [#tpu.dimension_semantics<parallel>], iteration_bounds = array<i64: 1>, scalar_prefetch = 0 : i64, scratch_operands = 0 : i64, tpu.core_type = #tpu.core_type<tc>, window_params = [{transform_indices = @transform_0, window_bounds = array<i64: 8, 30>}, {pipeline_mode = #tpu.pipeline_mode<synchronous>, transform_indices = @transform_1, window_bounds = array<i64: 30, 64>}, {pipeline_mode = #tpu.pipeline_mode<synchronous>, transform_indices = @transform_2, window_bounds = array<i64: 1, 64>}, {pipeline_mode = #tpu.pipeline_mode<synchronous>, transform_indices = @transform_3, window_bounds = array<i64: 1, 64>}, {transform_indices = @transform_4, window_bounds = array<i64: 1, 1>}, {transform_indices = @transform_5, window_bounds = array<i64: 1, 1, 8>}]} {
    %c0 = arith.constant 0 : index
    %c0_0 = arith.constant 0 : index
    %0 = vector.load %arg1[%c0, %c0_0] : memref<8x30xf32, #tpu.memory_space<vmem>>, vector<8x30xf32>
    %c0_1 = arith.constant 0 : index
    %c0_2 = arith.constant 0 : index
    %1 = vector.load %arg2[%c0_1, %c0_2] : memref<30x64xf32, #tpu.memory_space<vmem>>, vector<30x64xf32>
    %cst = arith.constant dense<0.000000e+00> : vector<8x64xf32>
    %2 = tpu.matmul %0, %1, %cst {dimension_numbers = #tpu.dot_dimension_numbers<[1], [0], [0], [1], [0, 0, 1, 1], [], []>} : vector<8x30xf32>, vector<30x64xf32>, vector<8x64xf32> -> vector<8x64xf32>
    %c0_3 = arith.constant 0 : index
    %c0_4 = arith.constant 0 : index
    %3 = vector.load %arg3[%c0_3, %c0_4] : memref<1x64xf32, #tpu.memory_space<vmem>>, vector<1x64xf32>
    %4 = vector.broadcast %3 : vector<1x64xf32> to vector<8x64xf32>
    %5 = arith.addf %2, %4 : vector<8x64xf32>
    %cst_5 = arith.constant 0.000000e+00 : f32
    %6 = vector.broadcast %cst_5 : f32 to vector<8x64xf32>
    %7 = arith.maximumf %5, %6 : vector<8x64xf32>
    %c0_6 = arith.constant 0 : index
    %c0_7 = arith.constant 0 : index
    %8 = vector.load %arg4[%c0_6, %c0_7] : memref<1x64xf32, #tpu.memory_space<vmem>>, vector<1x64xf32>
    %9 = vector.broadcast %8 : vector<1x64xf32> to vector<8x64xf32>
    %10 = arith.mulf %7, %9 : vector<8x64xf32>
    %cst_8 = arith.constant dense<0.000000e+00> : vector<8xf32>
    %11 = vector.multi_reduction <add>, %10, %cst_8 [1] : vector<8x64xf32> to vector<8xf32>
    %12 = vector.shape_cast %11 : vector<8xf32> to vector<8x1xf32>
    %c0_9 = arith.constant 0 : index
    %c0_10 = arith.constant 0 : index
    %13 = memref.load %arg5[%c0_9, %c0_10] : memref<1x1xf32, #tpu.memory_space<smem>>
    %14 = vector.broadcast %13 : f32 to vector<8x1xf32>
    %15 = arith.addf %12, %14 : vector<8x1xf32>
    %16 = arith.negf %15 : vector<8x1xf32>
    %17 = math.exp %16 : vector<8x1xf32>
    %cst_11 = arith.constant 1.000000e+00 : f32
    %18 = vector.broadcast %cst_11 : f32 to vector<8x1xf32>
    %19 = arith.addf %18, %17 : vector<8x1xf32>
    %20 = arith.divf %18, %19 : vector<8x1xf32>
    %21 = tpu.transpose %20, [1, 0] : vector<8x1xf32> -> vector<1x8xf32>
    %c0_12 = arith.constant 0 : index
    %c0_13 = arith.constant 0 : index
    %c0_14 = arith.constant 0 : index
    %22 = vector.load %arg6[%c0_12, %c0_13, %c0_14] : memref<1x1x8xf32, #tpu.memory_space<vmem>>, vector<1x1x8xf32>
    %23 = vector.shape_cast %22 : vector<1x1x8xf32> to vector<1x8xf32>
    %24 = vector.shape_cast %21 : vector<1x8xf32> to vector<1x1x8xf32>
    tpu.vector_store %arg6[%c0_12, %c0_13, %c0_14], %24 {strides = array<i32>} : memref<1x1x8xf32, #tpu.memory_space<vmem>>, vector<1x1x8xf32>,
    return
  }
  func.func @transform_0(%arg0: i32) -> (i32, i32) {
    %c0_i32 = arith.constant 0 : i32
    %c0_i32_0 = arith.constant 0 : i32
    return %arg0, %c0_i32 : i32, i32
  }
  func.func @transform_1(%arg0: i32) -> (i32, i32) {
    %c0_i32 = arith.constant 0 : i32
    %c0_i32_0 = arith.constant 0 : i32
    %c0_i32_1 = arith.constant 0 : i32
    return %c0_i32, %c0_i32_0 : i32, i32
  }
  func.func @transform_2(%arg0: i32) -> (i32, i32) {
    %c0_i32 = arith.constant 0 : i32
    %c0_i32_0 = arith.constant 0 : i32
    %c0_i32_1 = arith.constant 0 : i32
    return %c0_i32, %c0_i32_0 : i32, i32
  }
  func.func @transform_3(%arg0: i32) -> (i32, i32) {
    %c0_i32 = arith.constant 0 : i32
    %c0_i32_0 = arith.constant 0 : i32
    %c0_i32_1 = arith.constant 0 : i32
    return %c0_i32, %c0_i32_0 : i32, i32
  }
  func.func @transform_4(%arg0: i32) -> (i32, i32) {
    %c0_i32 = arith.constant 0 : i32
    %c0_i32_0 = arith.constant 0 : i32
    %c0_i32_1 = arith.constant 0 : i32
    return %c0_i32, %c0_i32_0 : i32, i32
  }
  func.func @transform_5(%arg0: i32) -> (i32, i32, i32) {
    %c0_i32 = arith.constant 0 : i32
    %c0_i32_0 = arith.constant 0 : i32
    %c0_i32_1 = arith.constant 0 : i32
    return %arg0, %c0_i32, %c0_i32_0 : i32, i32, i32
  }
}

</mosaic_0001>

<llo_original>
// kernel: tpu_custom_call.1
$region0: #{tpu_custom_call.1}
  #allocation0 [shape = 'u32[]', space=smem, size = 0x4, offset = 0x4, fixed_abs, tag = 'smem constant byte address 0x4 - core index']
  #allocation1 [shape = 'u32[144,128]{1,0:T(1,128)}', space=vmem, size = 0x12000, scoped, tag = 'internal scratch']
  #allocation2 [shape = 'f32[1,1]{1,0:T(1,128)S(6)}', space=smem, size = 0x200, scoped, tag = 'scoped memory for tpu_custom_call.1']
  %s0 = inlined_call_operand.hbm [shape: f32[8,30], index: 0, kind: input, shape index: {}]
  %s1 = inlined_call_operand.hbm [shape: f32[30,64], index: 1, kind: input, shape index: {}]
  %s2 = inlined_call_operand.vmem [shape: f32[1,64], index: 2, kind: input, shape index: {}]
  %s3 = inlined_call_operand.vmem [shape: f32[1,64], index: 3, kind: input, shape index: {}]
  %s4 = inlined_call_operand.<no memory space> [shape: f32[1,1], index: 4, kind: input, shape index: {}]
  %s5 = inlined_call_operand.hbm [shape: f32[1,1,8], index: 5, kind: output, shape index: {}]
  %s6 = sld [smem:[#allocation0]]
  $region38: #{tpu_custom_call.1} parent=0
    _
  %s8 = ssub.s32 1, %s6
  %s9 = scalar_select 0, %s8, %s6
  %10 = sst [smem:[#allocation2]] %s4
  $region1: #{tpu_custom_call.1} parent=0
    #allocation3 [shape = 'u8[4096]{0}', space=vmem, size = 0x1000, scoped, tag = 'input window, operand 0, single buffered']
    #allocation4 [shape = 's32[1]{0}', space=sflag, size = 0x4, scoped, tag = 'scoped memory for tpu_custom_call.1']
    #allocation5 [shape = 's32[1]{0}', space=sflag, size = 0x4, scoped, tag = 'scoped memory for tpu_custom_call.1']
    #allocation6 [shape = 'u8[16384]{0}', space=vmem, size = 0x4000, scoped, tag = 'input window, operand 1, single buffered']
    #allocation7 [shape = 's32[1]{0}', space=sflag, size = 0x4, scoped, tag = 'scoped memory for tpu_custom_call.1']
    #allocation8 [shape = 'u8[512]{0}', space=vmem, size = 0x400, scoped, tag = 'output window, operand 0, single buffered']
    %11 = vsyncpa [#allocation4], 0
    %12 = vsyncpa [#allocation7], 0
    %13 = vsyncpa [#allocation5], 0
    // Predicated region
    $region2: #{tpu_custom_call.1} parent=1 // pred_check
      _
    $region3: #{tpu_custom_call.1} parent=1 // pred_check_branch
      %15 = sbr.rel (0) target = $region5
    $region4: #{tpu_custom_call.1} parent=1 // pred_region
      %s17 = ssub.s32 128, 128
      %18 = vsyncadd [#allocation4], %s17
      %s20 = sshll.u32 [#allocation3], 4
      %s21 = int_to_ptr.vmem [resolvable:$true] %s20
      %23 = dma.hbm_to_vmem [thread:$0]  %s0, 128, %s21, [#allocation4]
    $region5: #{tpu_custom_call.1} parent=1 // pred_fallthru
      _
    // Predicated region
    $region6: #{tpu_custom_call.1} parent=1 // pred_check
      _
    $region7: #{tpu_custom_call.1} parent=1 // pred_check_branch
      %25 = sbr.rel (0) target = $region9
    $region8: #{tpu_custom_call.1} parent=1 // pred_region
      %s27 = ssub.s32 512, 512
      %28 = vsyncadd [#allocation7], %s27
      %s29 = sshll.u32 [#allocation6], 4
      %s30 = int_to_ptr.vmem [resolvable:$true] %s29
      %35 = dma.hbm_to_vmem [thread:$0]  %s1, 512, %s30, [#allocation7], 128, 128, 8
    $region9: #{tpu_custom_call.1} parent=1 // pred_fallthru
      _
    // Predicated region
    $region10: #{tpu_custom_call.1} parent=1 // pred_check
      _
    $region11: #{tpu_custom_call.1} parent=1 // pred_check_branch
      %37 = sbr.rel (0) target = $region13
    $region12: #{tpu_custom_call.1} parent=1 // pred_region
      _
    $region13: #{tpu_custom_call.1} parent=1 // pred_fallthru
      _
    // Predicated region
    $region14: #{tpu_custom_call.1} parent=1 // pred_check
      _
    $region15: #{tpu_custom_call.1} parent=1 // pred_check_branch
      %39 = sbr.rel (0) target = $region17
    $region16: #{tpu_custom_call.1} parent=1 // pred_region
      _
    $region17: #{tpu_custom_call.1} parent=1 // pred_fallthru
      _
    // Predicated region
    $region18: #{tpu_custom_call.1} parent=1 // pred_check
      _
    $region19: #{tpu_custom_call.1} parent=1 // pred_check_branch
      %41 = sbr.rel (0) target = $region21
    $region20: #{tpu_custom_call.1} parent=1 // pred_region
      _
    $region21: #{tpu_custom_call.1} parent=1 // pred_fallthru
      _
    // Predicated region
    $region22: #{tpu_custom_call.1} parent=1 // pred_check
      _
    $region23: #{tpu_custom_call.1} parent=1 // pred_check_branch
      %43 = sbr.rel (0) target = $region25
    $region24: #{tpu_custom_call.1} parent=1 // pred_region
      %44 = dma.done [#allocation4], 128
    $region25: #{tpu_custom_call.1} parent=1 // pred_fallthru
      _
    // Predicated region
    $region26: #{tpu_custom_call.1} parent=1 // pred_check
      _
    $region27: #{tpu_custom_call.1} parent=1 // pred_check_branch
      %46 = sbr.rel (0) target = $region29
    $region28: #{tpu_custom_call.1} parent=1 // pred_region
      %47 = dma.done [#allocation7], 512
    $region29: #{tpu_custom_call.1} parent=1 // pred_fallthru
      _
    %v48 = vld [vmem:[#allocation3] sm:$0xff]
    %v49 = vld [vmem:[#allocation6] sm:$0xff]
    %v50 = vld [vmem:[#allocation6 + $0x8] sm:$0xff]
    %v51 = vld [vmem:[#allocation6 + $0x10] sm:$0xff]
    %v52 = vld [vmem:[#allocation6 + $0x18] sm:$0x3f]
    %v53 = vld [vmem:[%s2] sm:$0x1]
    %v55 = vlaneseq
    %v56 = vshrl.u32 %v55, 7
    %v57 = vsub.s32 0, %v56
    %v58 = vrot.slane %v53, %v57
    %vm60 = vcmask 244736
    %v62 = vsel %vm60, %v48, 0
    %vm64 = vcmask 1045504
    %v66 = vsel %vm64, %v52, 0
    %68 = vmatprep.subr.mxu0 0.0
    %69 = vmatpush1.msra.mxu0 %v49
    %70 = vmatprep.subr.mxu0 0.0
    %71 = vmatpush1.msra.mxu0 %v50
    %72 = vmatprep.subr.mxu0 0.0
    %73 = vmatpush1.msra.mxu0 %v51
    %74 = vmatprep.subr.mxu0 0.0
    %75 = vmatpush1.msra.mxu0 %v66
    %76 = vmatprep.subr.mxu0 0.0
    %77 = vmatpush1.msra.mxu0 0.0
    %78 = vmatprep.subr.mxu0 0.0
    %79 = vmatpush1.msra.mxu0 0.0
    %80 = vmatprep.subr.mxu0 0.0
    %81 = vmatpush1.msra.mxu0 0.0
    %82 = vmatprep.subr.mxu0 0.0
    %83 = vmatpush1.msra.mxu0 0.0
    %84 = vmatprep.subr.mxu0 0.0
    %85 = vmatpush1.msra.mxu0 0.0
    %86 = vmatprep.subr.mxu0 0.0
    %87 = vmatpush1.msra.mxu0 0.0
    %88 = vmatprep.subr.mxu0 0.0
    %89 = vmatpush1.msra.mxu0 0.0
    %90 = vmatprep.subr.mxu0 0.0
    %91 = vmatpush1.msra.mxu0 0.0
    %92 = vmatprep.subr.mxu0 0.0
    %93 = vmatpush1.msra.mxu0 0.0
    %94 = vmatprep.subr.mxu0 0.0
    %95 = vmatpush1.msra.mxu0 0.0
    %96 = vmatprep.subr.mxu0 0.0
    %97 = vmatpush1.msra.mxu0 0.0
    %98 = vmatprep.subr.mxu0 0.0
    %99 = vmatpush1.msra.mxu0 0.0
    %100 = vmatprep.subr.mxu0 0.0
    %101 = vmatpush1.msra.mxu0 0.0
    %102 = vmatprep.subr.mxu0 0.0
    %103 = vmatpush1.msra.mxu0 0.0
    %104 = vmatprep.subr.mxu0 0.0
    %105 = vmatpush1.msra.mxu0 0.0
    %106 = vmatprep.subr.mxu0 0.0
    %107 = vmatpush1.msra.mxu0 0.0
    %108 = vmatprep.subr.mxu0 0.0
    %109 = vmatpush1.msra.mxu0 0.0
    %110 = vmatprep.subr.mxu0 0.0
    %111 = vmatpush1.msra.mxu0 0.0
    %112 = vmatprep.subr.mxu0 0.0
    %113 = vmatpush1.msra.mxu0 0.0
    %114 = vmatprep.subr.mxu0 0.0
    %115 = vmatpush1.msra.mxu0 0.0
    %116 = vmatprep.subr.mxu0 0.0
    %117 = vmatpush1.msra.mxu0 0.0
    %118 = vmatprep.subr.mxu0 0.0
    %119 = vmatpush1.msra.mxu0 0.0
    %120 = vmatprep.subr.mxu0 0.0
    %121 = vmatpush1.msra.mxu0 0.0
    %122 = vmatprep.subr.mxu0 0.0
    %123 = vmatpush1.msra.mxu0 0.0
    %124 = vmatprep.subr.mxu0 0.0
    %125 = vmatpush1.msra.mxu0 0.0
    %126 = vmatprep.subr.mxu0 0.0
    %127 = vmatpush1.msra.mxu0 0.0
    %128 = vmatprep.subr.mxu0 0.0
    %129 = vmatpush1.msra.mxu0 0.0
    %130 = vmatprep.subr.mxu0 0.0
    %131 = vmatpush1.msra.mxu0 0.0
    %132 = vmatprep.mubr.f32.mxu0 0.0
    %133 = vmatmul.mubr.f32.gmra.mrb[0].mxu0 %v62
    %v134 = vpop.f32.mrb[0].mxu0
    %v135 = vadd.f32 %v58, %v134
    %v136 = vpop.f32.mrb[0].mxu0
    %137 = vdwg.mxu0
    %v138 = vmax.f32 %v135, 0.0
    %v139 = vld [vmem:[%s3] sm:$0x1]
    %v141 = vlaneseq
    %v142 = vshrl.u32 %v141, 7
    %v143 = vsub.s32 0, %v142
    %v144 = vrot.slane %v139, %v143
    %v146 = vmul.f32 %v138, %v144
    %vm147 = vcmask 523264
    %v148 = vsel %vm147, %v146, 0.0
    %149 = vadd.xlane.f32.xlu0 %v148
    %v150 = vpop.xlane.xlu0 %149
    %s151 = sld [smem:[#allocation2]]
    %v152 = vstv %s151
    %v153 = vadd.f32 %v150, %v152
    %v154 = vxor.u32 %v153, 2147483648
    %v155 = vmul.f32 %v154, 1.442695
    %v156 = vpow.pop %v155
    %v157 = vadd.f32 %v156, 1.0
    %v158 = vrcp.pop %v157
    %v159 = vmul.f32 1.0, %v158
    %160 = vxpose.xlu0.b32.start [1/16] %v159, 128
    %161 = vxpose.xlu0.b32.cont [2/16] 0.0, 128
    %162 = vxpose.xlu0.b32.cont [3/16] 0.0, 128
    %163 = vxpose.xlu0.b32.cont [4/16] 0.0, 128
    %164 = vxpose.xlu0.b32.cont [5/16] 0.0, 128
    %165 = vxpose.xlu0.b32.cont [6/16] 0.0, 128
    %166 = vxpose.xlu0.b32.cont [7/16] 0.0, 128
    %167 = vxpose.xlu0.b32.cont [8/16] 0.0, 128
    %168 = vxpose.xlu0.b32.cont [9/16] 0.0, 128
    %169 = vxpose.xlu0.b32.cont [10/16] 0.0, 128
    %170 = vxpose.xlu0.b32.cont [11/16] 0.0, 128
    %171 = vxpose.xlu0.b32.cont [12/16] 0.0, 128
    %172 = vxpose.xlu0.b32.cont [13/16] 0.0, 128
    %173 = vxpose.xlu0.b32.cont [14/16] 0.0, 128
    %174 = vxpose.xlu0.b32.cont [15/16] 0.0, 128
    %175 = vxpose.xlu0.b32.end [16/16] 0.0, 128
    %v176 = vpop.trf.xlu0
    %v177 = vpop.trf.xlu0
    %v178 = vpop.trf.xlu0
    %v179 = vpop.trf.xlu0
    %v180 = vpop.trf.xlu0
    %v181 = vpop.trf.xlu0
    %v182 = vpop.trf.xlu0
    %v183 = vpop.trf.xlu0
    %v184 = vpop.trf.xlu0
    %v185 = vpop.trf.xlu0
    %v186 = vpop.trf.xlu0
    %v187 = vpop.trf.xlu0
    %v188 = vpop.trf.xlu0
    %v189 = vpop.trf.xlu0
    %v190 = vpop.trf.xlu0
    %v191 = vpop.trf.xlu0
    %vm192 = vcmask 57344
    %193 = vst.msk [vmem:[#allocation8] sm:$0x1] %vm192, %v176
    // Predicated region
    $region30: #{tpu_custom_call.1} parent=1 // pred_check
      _
    $region31: #{tpu_custom_call.1} parent=1 // pred_check_branch
      %195 = sbr.rel (0) target = $region33
    $region32: #{tpu_custom_call.1} parent=1 // pred_region
      %s197 = ssub.s32 16, 16
      %198 = vsyncadd [#allocation5], %s197
      %s200 = sshll.u32 [#allocation8], 4
      %s201 = int_to_ptr.vmem [resolvable:$true] %s200
      %203 = dma.vmem_to_hbm [thread:$0]  %s201, 16, %s5, [#allocation5]
    $region33: #{tpu_custom_call.1} parent=1 // pred_fallthru
      _
    // Predicated region
    $region34: #{tpu_custom_call.1} parent=1 // pred_check
      _
    $region35: #{tpu_custom_call.1} parent=1 // pred_check_branch
      %205 = sbr.rel (0) target = $region37
    $region36: #{tpu_custom_call.1} parent=1 // pred_region
      %206 = dma.done [#allocation5], 16
    $region37: #{tpu_custom_call.1} parent=1 // pred_fallthru
      _
    %207 = vsyncpa [#allocation4], 1
    %208 = vsyncpa [#allocation7], 1
    %209 = vsyncpa [#allocation5], 1

</llo_original>
